<compile_context>
chip_gen: v7x
topology: tpu7x:2x2x1
jax: 0.10.0
libtpu: 0.0.40
codegen_flags: <defaults>
</compile_context>

<pallas_src>
import math

import jax
import jax.numpy as jnp
from jax.experimental import pallas as pl
from jax.experimental.pallas import tpu as pltpu


# ----------------------------------------------------------------------------
# Kernel
# ----------------------------------------------------------------------------
def _nac_kernel(x_ref, w_hat_ref, m_hat_ref, o_ref, gate_ref, acc_ref):
    i = pl.program_id(1)   # batch tile       (sequential, "arbitrary")
    k = pl.program_id(2)   # in_dim K stripe  (sequential, "arbitrary")

    # Gate the weights once per (out_dim tile, K stripe): only at the first
    # batch tile.  Later batch tiles reuse the bf16 cache (and, via the clamped
    # index_map in the wrapper, do not even re-stream W_hat/M_hat from HBM).
    # NOTE: correctness of this cache + the K accumulator requires grid axes 1
    # and 2 to stay "arbitrary" (sequential, i == 0 / k == 0 first).
    @pl.when(i == 0)
    def _():
        w_hat = w_hat_ref[...].astype(jnp.float32)
        m_hat = m_hat_ref[...].astype(jnp.float32)
        # sigmoid(m) == 0.5 * (tanh(0.5 * m) + 1): two EUP tanh ops, no exp
        # overflow / approx-reciprocal edge cases.  Gate math in f32 (v5e-safe),
        # cached in bf16 for the MXU.
        gate = jnp.tanh(w_hat) * (0.5 * jnp.tanh(0.5 * m_hat) + 0.5)
        gate_ref[k] = gate.astype(gate_ref.dtype)

    @pl.when(k == 0)
    def _():
        acc_ref[...] = jnp.zeros_like(acc_ref)

    # bf16 x bf16 -> f32-accumulated MXU matmul on the cached gated weights.
    acc_ref[...] += jnp.dot(
        x_ref[...], gate_ref[k], preferred_element_type=jnp.float32
    )

    @pl.when(k == pl.num_programs(2) - 1)
    def _():
        o_ref[...] = acc_ref[...].astype(o_ref.dtype)


# ----------------------------------------------------------------------------
# Wrapper
# ----------------------------------------------------------------------------
_TM_TARGET = 256
_TN_CAP = 2048


def _cdiv(a, b):
    return -(-a // b)


def _round_up(v, m):
    return _cdiv(v, m) * m


def _vmem_capacity_bytes():
    """Per-core VMEM capacity (128 MiB v5e/v6e, 64 MiB per TC on v7x)."""
    try:
        cap = getattr(pltpu.get_tpu_info(), "vmem_capacity_bytes", None)
        if cap:
            return max(32 << 20, min(int(cap), 128 << 20))
    except Exception:
        pass
    return 64 << 20   # conservative per-core fallback (v7x-sized)


def _pad_cast(a, rows, cols, dtype):
    """Cast to `dtype` and zero-pad to [rows, cols]; skip the pad if aligned."""
    a = a.astype(dtype)               # cast first: fuses with the pad copy
    pr, pc = rows - a.shape[0], cols - a.shape[1]
    if pr or pc:
        a = jnp.pad(a, ((0, pr), (0, pc)))
    return a


def nac_forward(x, w_hat, m_hat, *, tm=None, tn=None, tk=None):
    """NAC forward: x @ (tanh(w_hat) * sigmoid(m_hat)).

    x:      [batch, in_dim]   float32 (or bf16)
    w_hat:  [in_dim, out_dim] float32 (or bf16)
    m_hat:  [in_dim, out_dim] float32 (or bf16)
    tm/tn/tk optionally override the batch / out_dim / in_dim tile sizes.
    returns [batch, out_dim] in x.dtype.
    """
    batch, in_dim = x.shape
    in_dim_w, out_dim = w_hat.shape
    assert in_dim == in_dim_w and m_hat.shape == w_hat.shape

    vmem_cap = _vmem_capacity_bytes()
    tile_budget = int(0.75 * vmem_cap)   # headroom for Mosaic internal scratch

    # ---- batch (sublane) tile ----------------------------------------------
    if tm is None:
        if batch <= _TM_TARGET:
            tm = _round_up(batch, 16)
        else:  # spread batch over tiles of ~_TM_TARGET rows, minimizing padding
            tm = _round_up(_cdiv(batch, _cdiv(batch, _TM_TARGET)), 16)
    m_pad = _round_up(batch, tm)

    # ---- in_dim (reduction) stripe: full-K by default -----------------------
    user_tk = tk is not None
    if tk is None:
        tk = _round_up(in_dim, 128)

    bf16, f32 = 2, 4

    def footprint(tn_, tk_):
        k_pad_ = _round_up(in_dim, tk_)
        return (2 * tm * tk_ * bf16          # x tile (double-buffered)
                + 2 * 2 * tk_ * tn_ * bf16   # W_hat + M_hat tiles (double-buffered)
                + 2 * tm * tn_ * f32         # output tile (double-buffered)
                + tm * tn_ * f32             # f32 K-accumulator scratch
                + k_pad_ * tn_ * bf16        # bf16 gated-weight cache (all stripes)
                + 2 * tk_ * tn_ * f32)       # f32 temporaries during gating

    # ---- out_dim (lane) tile -------------------------------------------------
    n_pad0 = _round_up(out_dim, 128)
    if tn is None:
        # Prefer streaming x exactly once (tn == padded out_dim); for large
        # out_dim keep >= 2 out-dim tiles (v7x megacore) with tn >= 512.
        tn = n_pad0 if n_pad0 < 1024 else _round_up(_cdiv(n_pad0, 2), 128)
        tn = min(tn, _TN_CAP)
        while tn > 128 and footprint(tn, tk) > tile_budget:
            tn -= 128
        if not user_tk:
            # K-tiling fallback: the full-K stripe does not fit even at tn=128.
            while tk > 128 and footprint(tn, tk) > tile_budget:
                tk = max(128, _round_up(tk // 2, 128))

    k_pad = _round_up(in_dim, tk)
    n_pad = _round_up(out_dim, tn)
    nk = k_pad // tk
    nj = n_pad // tn
    ni = m_pad // tm
    grid = (nj, ni, nk)   # (out_dim tiles, batch tiles, K stripes)

    # W_hat/M_hat are only read while building the gate (i == 0); for i > 0 the
    # block index is clamped to the last stripe so the pipeline does not
    # re-stream them from HBM once per batch tile.
    if nk == 1:
        wm_map = lambda j, i, k: (0, j)
    else:
        last_k = nk - 1
        wm_map = lambda j, i, k: (jnp.where(i == 0, k, last_k), j)

    # ---- bf16 cast fused with (conditional) zero-padding --------------------
    x_p = _pad_cast(x, m_pad, k_pad, jnp.bfloat16)
    w_p = _pad_cast(w_hat, k_pad, n_pad, jnp.bfloat16)
    m_p = _pad_cast(m_hat, k_pad, n_pad, jnp.bfloat16)

    cost = pl.CostEstimate(
        flops=2 * m_pad * k_pad * n_pad,
        transcendentals=2 * k_pad * n_pad,            # two tanh per gate element
        bytes_accessed=(bf16 * nj * m_pad * k_pad     # x re-streamed per out_dim tile
                        + 2 * bf16 * k_pad * n_pad    # W_hat + M_hat read once each
                        + f32 * m_pad * n_pad),       # output written once
    )

    out_p = pl.pallas_call(
        _nac_kernel,
        out_shape=jax.ShapeDtypeStruct((m_pad, n_pad), x.dtype),
        grid_spec=pltpu.PrefetchScalarGridSpec(
            num_scalar_prefetch=0,
            grid=grid,
            in_specs=[
                pl.BlockSpec((tm, tk), lambda j, i, k: (i, k)),   # x       (bf16)
                pl.BlockSpec((tk, tn), wm_map),                   # W_hat   (bf16)
                pl.BlockSpec((tk, tn), wm_map),                   # M_hat   (bf16)
            ],
            out_specs=pl.BlockSpec((tm, tn), lambda j, i, k: (i, j)),
            scratch_shapes=[
                pltpu.VMEM((nk, tk, tn), jnp.bfloat16),   # gated-weight cache
                pltpu.VMEM((tm, tn), jnp.float32),        # K accumulator
            ],
        ),
        compiler_params=pltpu.CompilerParams(
            # Axis 0 (out_dim tiles) is independent -> "parallel" (megacore on
            # v7x).  Axes 1 (batch tiles) and 2 (K stripes) MUST stay
            # "arbitrary": the gate cache is built at i == 0 and the f32
            # accumulator is carried across k.
            dimension_semantics=("parallel", "arbitrary", "arbitrary"),
            vmem_limit_bytes=int(0.9 * vmem_cap),
        ),
        cost_estimate=cost,
    )(x_p, w_p, m_p)

    return out_p[:batch, :out_dim]


nac_forward_jit = jax.jit(nac_forward, static_argnames=("tm", "tn", "tk"))


# ----------------------------------------------------------------------------
# Self-test
# ----------------------------------------------------------------------------
def xavier_uniform(key, shape, dtype=jnp.float32):
    """Matches torch.nn.init.xavier_uniform_ for a 2-D tensor [fan_in, fan_out]."""
    fan_in, fan_out = shape
    limit = math.sqrt(6.0 / (fan_in + fan_out))
    return jax.random.uniform(key, shape, dtype=dtype, minval=-limit, maxval=limit)


def _check(x, w_hat, m_hat, tm=None, tn=None, tk=None):
    y = nac_forward_jit(x, w_hat, m_hat, tm=tm, tn=tn, tk=tk)
    jax.block_until_ready(y)
    # Pure-JAX f32 reference (exact PyTorch semantics).
    w_ref = jnp.tanh(w_hat) * jax.nn.sigmoid(m_hat)
    y_ref = x @ w_ref
    assert y.shape == y_ref.shape and y.dtype == y_ref.dtype
    max_err = float(jnp.max(jnp.abs(y - y_ref)))
    # bf16 MXU operands + bf16 gate cache -> loosened tolerance vs the f32 ref.
    assert jnp.allclose(y, y_ref, atol=2e-2, rtol=2e-2), max_err
    return y


if __name__ == "__main__":
    key = jax.random.PRNGKey(0)
    keys = jax.random.split(key, 9)

    # Toy shape from the module spec (single tile in every grid dim).
    b1, k1, n1 = 8, 32, 16
    _check(jax.random.normal(keys[0], (b1, k1), jnp.float32),
           xavier_uniform(keys[1], (k1, n1)),
           xavier_uniform(keys[2], (k1, n1)))

    # Padding in every dim + 2 batch tiles: exercises the per-out_dim-tile
    # gate cache being reused across batch tiles.
    b2, k2, n2 = 260, 96, 200
    _check(jax.random.normal(keys[3], (b2, k2), jnp.float32),
           xavier_uniform(keys[4], (k2, n2)),
           xavier_uniform(keys[5], (k2, n2)))

    # Forced small tn/tk: exercises the full 3-D grid (multiple out_dim tiles,
    # batch tiles and K stripes), the K-tiling accumulator path and the clamped
    # W_hat/M_hat index map.
    b3, k3, n3 = 320, 384, 300
    _check(jax.random.normal(keys[6], (b3, k3), jnp.float32),
           xavier_uniform(keys[7], (k3, n3)),
           xavier_uniform(keys[8], (k3, n3)),
           tn=128, tk=128)

    print("KERNEL_OK")
</pallas_src>

<mosaic_0001>
module attributes {stable_mosaic.version = 11 : i64} {
  func.func @_nac_kernel(%arg0: i32, %arg1: i32, %arg2: i32, %arg3: memref<16x128xbf16, #tpu.memory_space<vmem>>, %arg4: memref<128x128xbf16, #tpu.memory_space<vmem>>, %arg5: memref<128x128xbf16, #tpu.memory_space<vmem>>, %arg6: memref<16x128xf32, #tpu.memory_space<vmem>>, %arg7: memref<1x128x128xbf16, #tpu.memory_space<vmem>>, %arg8: memref<16x128xf32, #tpu.memory_space<vmem>>) attributes {dimension_semantics = [#tpu.dimension_semantics<parallel>, #tpu.dimension_semantics<arbitrary>, #tpu.dimension_semantics<arbitrary>], iteration_bounds = array<i64: 1, 1, 1>, scalar_prefetch = 0 : i64, scratch_operands = 2 : i64, tpu.core_type = #tpu.core_type<tc>, window_params = [{transform_indices = @transform_0, window_bounds = array<i64: 16, 128>}, {transform_indices = @transform_1, window_bounds = array<i64: 128, 128>}, {transform_indices = @transform_2, window_bounds = array<i64: 128, 128>}, {transform_indices = @transform_3, window_bounds = array<i64: 16, 128>}]} {
    %c0_i32 = arith.constant 0 : i32
    %0 = arith.cmpi eq, %arg1, %c0_i32 : i32
    %1 = arith.extui %0 : i1 to i32
    %c0_i32_0 = arith.constant 0 : i32
    %2 = arith.cmpi ne, %1, %c0_i32_0 : i32
    scf.if %2 {
      %c0_12 = arith.constant 0 : index
      %c0_13 = arith.constant 0 : index
      %17 = vector.load %arg4[%c0_12, %c0_13] : memref<128x128xbf16, #tpu.memory_space<vmem>>, vector<128x128xbf16>
      %18 = arith.extf %17 : vector<128x128xbf16> to vector<128x128xf32>
      %c0_14 = arith.constant 0 : index
      %c0_15 = arith.constant 0 : index
      %19 = vector.load %arg5[%c0_14, %c0_15] : memref<128x128xbf16, #tpu.memory_space<vmem>>, vector<128x128xbf16>
      %20 = arith.extf %19 : vector<128x128xbf16> to vector<128x128xf32>
      %21 = math.tanh %18 : vector<128x128xf32>
      %cst_16 = arith.constant 5.000000e-01 : f32
      %22 = vector.broadcast %cst_16 : f32 to vector<128x128xf32>
      %23 = arith.mulf %22, %20 : vector<128x128xf32>
      %24 = math.tanh %23 : vector<128x128xf32>
      %cst_17 = arith.constant 5.000000e-01 : f32
      %25 = vector.broadcast %cst_17 : f32 to vector<128x128xf32>
      %26 = arith.mulf %25, %24 : vector<128x128xf32>
      %cst_18 = arith.constant 5.000000e-01 : f32
      %27 = vector.broadcast %cst_18 : f32 to vector<128x128xf32>
      %28 = arith.addf %26, %27 : vector<128x128xf32>
      %29 = arith.mulf %21, %28 : vector<128x128xf32>
      %30 = arith.truncf %29 : vector<128x128xf32> to vector<128x128xbf16>
      %31 = arith.index_cast %arg2 : i32 to index
      %c0_19 = arith.constant 0 : index
      %c0_20 = arith.constant 0 : index
      %32 = vector.load %arg7[%31, %c0_19, %c0_20] : memref<1x128x128xbf16, #tpu.memory_space<vmem>>, vector<1x128x128xbf16>
      %33 = vector.shape_cast %32 : vector<1x128x128xbf16> to vector<128x128xbf16>
      %34 = vector.shape_cast %30 : vector<128x128xbf16> to vector<1x128x128xbf16>
      tpu.vector_store %arg7[%31, %c0_19, %c0_20], %34 {strides = array<i32>} : memref<1x128x128xbf16, #tpu.memory_space<vmem>>, vector<1x128x128xbf16>,
    } else {
    }
    %c0_i32_1 = arith.constant 0 : i32
    %3 = arith.cmpi eq, %arg2, %c0_i32_1 : i32
    %4 = arith.extui %3 : i1 to i32
    %c0_i32_2 = arith.constant 0 : i32
    %5 = arith.cmpi ne, %4, %c0_i32_2 : i32
    scf.if %5 {
      %cst_12 = arith.constant 0.000000e+00 : f32
      %17 = vector.broadcast %cst_12 : f32 to vector<16x128xf32>
      %c0_13 = arith.constant 0 : index
      %c0_14 = arith.constant 0 : index
      %18 = vector.load %arg8[%c0_13, %c0_14] : memref<16x128xf32, #tpu.memory_space<vmem>>, vector<16x128xf32>
      tpu.vector_store %arg8[%c0_13, %c0_14], %17 {strides = array<i32>} : memref<16x128xf32, #tpu.memory_space<vmem>>, vector<16x128xf32>,
    } else {
    }
    %c0 = arith.constant 0 : index
    %c0_3 = arith.constant 0 : index
    %6 = vector.load %arg8[%c0, %c0_3] : memref<16x128xf32, #tpu.memory_space<vmem>>, vector<16x128xf32>
    %c0_4 = arith.constant 0 : index
    %c0_5 = arith.constant 0 : index
    %7 = vector.load %arg3[%c0_4, %c0_5] : memref<16x128xbf16, #tpu.memory_space<vmem>>, vector<16x128xbf16>
    %8 = arith.index_cast %arg2 : i32 to index
    %c0_6 = arith.constant 0 : index
    %c0_7 = arith.constant 0 : index
    %9 = vector.load %arg7[%8, %c0_6, %c0_7] : memref<1x128x128xbf16, #tpu.memory_space<vmem>>, vector<1x128x128xbf16>
    %10 = vector.shape_cast %9 : vector<1x128x128xbf16> to vector<128x128xbf16>
    %cst = arith.constant dense<0.000000e+00> : vector<16x128xf32>
    %11 = tpu.matmul %7, %10, %cst {dimension_numbers = #tpu.dot_dimension_numbers<[1], [0], [0], [1], [0, 0, 1, 1], [], []>} : vector<16x128xbf16>, vector<128x128xbf16>, vector<16x128xf32> -> vector<16x128xf32>
    %12 = arith.addf %6, %11 : vector<16x128xf32>
    %c0_8 = arith.constant 0 : index
    %c0_9 = arith.constant 0 : index
    %13 = vector.load %arg8[%c0_8, %c0_9] : memref<16x128xf32, #tpu.memory_space<vmem>>, vector<16x128xf32>
    tpu.vector_store %arg8[%c0_8, %c0_9], %12 {strides = array<i32>} : memref<16x128xf32, #tpu.memory_space<vmem>>, vector<16x128xf32>,
    %c0_i32_10 = arith.constant 0 : i32
    %14 = arith.cmpi eq, %arg2, %c0_i32_10 : i32
    %15 = arith.extui %14 : i1 to i32
    %c0_i32_11 = arith.constant 0 : i32
    %16 = arith.cmpi ne, %15, %c0_i32_11 : i32
    scf.if %16 {
      %c0_12 = arith.constant 0 : index
      %c0_13 = arith.constant 0 : index
      %17 = vector.load %arg8[%c0_12, %c0_13] : memref<16x128xf32, #tpu.memory_space<vmem>>, vector<16x128xf32>
      %c0_14 = arith.constant 0 : index
      %c0_15 = arith.constant 0 : index
      %18 = vector.load %arg6[%c0_14, %c0_15] : memref<16x128xf32, #tpu.memory_space<vmem>>, vector<16x128xf32>
      tpu.vector_store %arg6[%c0_14, %c0_15], %17 {strides = array<i32>} : memref<16x128xf32, #tpu.memory_space<vmem>>, vector<16x128xf32>,
    } else {
    }
    return
  }
  func.func @transform_0(%arg0: i32, %arg1: i32, %arg2: i32) -> (i32, i32) {
    %c0_i32 = arith.constant 0 : i32
    return %arg1, %arg2 : i32, i32
  }
  func.func @transform_1(%arg0: i32, %arg1: i32, %arg2: i32) -> (i32, i32) {
    %c0_i32 = arith.constant 0 : i32
    %c0_i32_0 = arith.constant 0 : i32
    return %c0_i32, %arg0 : i32, i32
  }
  func.func @transform_2(%arg0: i32, %arg1: i32, %arg2: i32) -> (i32, i32) {
    %c0_i32 = arith.constant 0 : i32
    %c0_i32_0 = arith.constant 0 : i32
    return %c0_i32, %arg0 : i32, i32
  }
  func.func @transform_3(%arg0: i32, %arg1: i32, %arg2: i32) -> (i32, i32) {
    %c0_i32 = arith.constant 0 : i32
    return %arg1, %arg0 : i32, i32
  }
}

</mosaic_0001>

<llo_original>
// kernel: nac_forward.1
$region0: #{nac_forward.1}
  #allocation0 [shape = 'u32[]', space=smem, size = 0x4, offset = 0x4, fixed_abs, tag = 'smem constant byte address 0x4 - core index']
  #allocation1 [shape = 'u32[144,128]{1,0:T(1,128)}', space=vmem, size = 0x12000, scoped, tag = 'internal scratch']
  #allocation2 [shape = 'bf16[1,128,128]{2,1,0:T(16,128)(2,1)}', space=vmem, size = 0x8000, scoped, tag = 'scratch operand']
  #allocation3 [shape = 'f32[16,128]{1,0:T(8,128)}', space=vmem, size = 0x2000, scoped, tag = 'scratch operand']
  %s0 = inlined_call_operand.vmem [shape: bf16[16,128], index: 0, kind: input, shape index: {}]
  %s1 = inlined_call_operand.vmem [shape: bf16[128,128], index: 1, kind: input, shape index: {}]
  %s2 = inlined_call_operand.vmem [shape: bf16[128,128], index: 2, kind: input, shape index: {}]
  %s3 = inlined_call_operand.vmem [shape: f32[16,128], index: 3, kind: output, shape index: {}]
  %s4 = sld [smem:[#allocation0]]
  $region34: #{nac_forward.1} parent=0
    _
  %s6 = ssub.s32 1, %s4
  %s7 = scalar_select 0, %s6, %s4
  // Predicated region
  $region2: #{nac_forward.1} parent=0 // pred_check
    _
  $region3: #{nac_forward.1} parent=0 // pred_check_branch
    %9 = sbr.rel (0) target = $region5
  $region4: #{nac_forward.1} parent=0 // pred_region
    _
  $region5: #{nac_forward.1} parent=0 // pred_fallthru
    _
  // Predicated region
  $region6: #{nac_forward.1} parent=0 // pred_check
    _
  $region7: #{nac_forward.1} parent=0 // pred_check_branch
    %11 = sbr.rel (0) target = $region9
  $region8: #{nac_forward.1} parent=0 // pred_region
    _
  $region9: #{nac_forward.1} parent=0 // pred_fallthru
    _
  // Predicated region
  $region10: #{nac_forward.1} parent=0 // pred_check
    _
  $region11: #{nac_forward.1} parent=0 // pred_check_branch
    %13 = sbr.rel (0) target = $region13
  $region12: #{nac_forward.1} parent=0 // pred_region
    _
  $region13: #{nac_forward.1} parent=0 // pred_fallthru
    _
  %p15 = scmp.eq.s32.totalorder 0, 0
  // Predicated region
  $region14: #{nac_forward.1} parent=0 // pred_check
    %p16 = pneg %p15
  $region15: #{nac_forward.1} parent=0 // pred_check_branch
    %18 = sbr.rel (%p16) target = $region17
  $region16: #{nac_forward.1} parent=0 // pred_region
    %v19 = vld [vmem:[%s1] sm:$0xf]
    %v20 = vld [vmem:[%s1 + $0x4] sm:$0xf]
    %v21 = vld [vmem:[%s1 + $0x8] sm:$0xf]
    %v22 = vld [vmem:[%s1 + $0xc] sm:$0xf]
    %v23 = vld [vmem:[%s1 + $0x10] sm:$0xf]
    %v24 = vld [vmem:[%s1 + $0x14] sm:$0xf]
    %v25 = vld [vmem:[%s1 + $0x18] sm:$0xf]
    %v26 = vld [vmem:[%s1 + $0x1c] sm:$0xf]
    %v27 = vld [vmem:[%s1 + $0x20] sm:$0xf]
    %v28 = vld [vmem:[%s1 + $0x24] sm:$0xf]
    %v29 = vld [vmem:[%s1 + $0x28] sm:$0xf]
    %v30 = vld [vmem:[%s1 + $0x2c] sm:$0xf]
    %v31 = vld [vmem:[%s1 + $0x30] sm:$0xf]
    %v32 = vld [vmem:[%s1 + $0x34] sm:$0xf]
    %v33 = vld [vmem:[%s1 + $0x38] sm:$0xf]
    %v34 = vld [vmem:[%s1 + $0x3c] sm:$0xf]
    %v35 = vunpack.c.l.bf16 %v19
    %v36 = vunpack.c.l.bf16 %v20
    %v37 = vunpack.c.l.bf16 %v21
    %v38 = vunpack.c.l.bf16 %v22
    %v39 = vunpack.c.l.bf16 %v23
    %v40 = vunpack.c.l.bf16 %v24
    %v41 = vunpack.c.l.bf16 %v25
    %v42 = vunpack.c.l.bf16 %v26
    %v43 = vunpack.c.l.bf16 %v27
    %v44 = vunpack.c.l.bf16 %v28
    %v45 = vunpack.c.l.bf16 %v29
    %v46 = vunpack.c.l.bf16 %v30
    %v47 = vunpack.c.l.bf16 %v31
    %v48 = vunpack.c.l.bf16 %v32
    %v49 = vunpack.c.l.bf16 %v33
    %v50 = vunpack.c.l.bf16 %v34
    %v51 = vld [vmem:[%s2] sm:$0xf]
    %v52 = vld [vmem:[%s2 + $0x4] sm:$0xf]
    %v53 = vld [vmem:[%s2 + $0x8] sm:$0xf]
    %v54 = vld [vmem:[%s2 + $0xc] sm:$0xf]
    %v55 = vld [vmem:[%s2 + $0x10] sm:$0xf]
    %v56 = vld [vmem:[%s2 + $0x14] sm:$0xf]
    %v57 = vld [vmem:[%s2 + $0x18] sm:$0xf]
    %v58 = vld [vmem:[%s2 + $0x1c] sm:$0xf]
    %v59 = vld [vmem:[%s2 + $0x20] sm:$0xf]
    %v60 = vld [vmem:[%s2 + $0x24] sm:$0xf]
    %v61 = vld [vmem:[%s2 + $0x28] sm:$0xf]
    %v62 = vld [vmem:[%s2 + $0x2c] sm:$0xf]
    %v63 = vld [vmem:[%s2 + $0x30] sm:$0xf]
    %v64 = vld [vmem:[%s2 + $0x34] sm:$0xf]
    %v65 = vld [vmem:[%s2 + $0x38] sm:$0xf]
    %v66 = vld [vmem:[%s2 + $0x3c] sm:$0xf]
    %v67 = vunpack.c.l.bf16 %v51
    %v68 = vunpack.c.l.bf16 %v52
    %v69 = vunpack.c.l.bf16 %v53
    %v70 = vunpack.c.l.bf16 %v54
    %v71 = vunpack.c.l.bf16 %v55
    %v72 = vunpack.c.l.bf16 %v56
    %v73 = vunpack.c.l.bf16 %v57
    %v74 = vunpack.c.l.bf16 %v58
    %v75 = vunpack.c.l.bf16 %v59
    %v76 = vunpack.c.l.bf16 %v60
    %v77 = vunpack.c.l.bf16 %v61
    %v78 = vunpack.c.l.bf16 %v62
    %v79 = vunpack.c.l.bf16 %v63
    %v80 = vunpack.c.l.bf16 %v64
    %v81 = vunpack.c.l.bf16 %v65
    %v82 = vunpack.c.l.bf16 %v66
    %v83 = vtanh.pop %v35
    %v84 = vtanh.pop %v36
    %v85 = vtanh.pop %v37
    %v86 = vtanh.pop %v38
    %v87 = vtanh.pop %v39
    %v88 = vtanh.pop %v40
    %v89 = vtanh.pop %v41
    %v90 = vtanh.pop %v42
    %v91 = vtanh.pop %v43
    %v92 = vtanh.pop %v44
    %v93 = vtanh.pop %v45
    %v94 = vtanh.pop %v46
    %v95 = vtanh.pop %v47
    %v96 = vtanh.pop %v48
    %v97 = vtanh.pop %v49
    %v98 = vtanh.pop %v50
    %v99 = vmul.f32 %v67, 0.5
    %v100 = vmul.f32 %v68, 0.5
    %v101 = vmul.f32 %v69, 0.5
    %v102 = vmul.f32 %v70, 0.5
    %v103 = vmul.f32 %v71, 0.5
    %v104 = vmul.f32 %v72, 0.5
    %v105 = vmul.f32 %v73, 0.5
    %v106 = vmul.f32 %v74, 0.5
    %v107 = vmul.f32 %v75, 0.5
    %v108 = vmul.f32 %v76, 0.5
    %v109 = vmul.f32 %v77, 0.5
    %v110 = vmul.f32 %v78, 0.5
    %v111 = vmul.f32 %v79, 0.5
    %v112 = vmul.f32 %v80, 0.5
    %v113 = vmul.f32 %v81, 0.5
    %v114 = vmul.f32 %v82, 0.5
    %v115 = vtanh.pop %v99
    %v116 = vtanh.pop %v100
    %v117 = vtanh.pop %v101
    %v118 = vtanh.pop %v102
    %v119 = vtanh.pop %v103
    %v120 = vtanh.pop %v104
    %v121 = vtanh.pop %v105
    %v122 = vtanh.pop %v106
    %v123 = vtanh.pop %v107
    %v124 = vtanh.pop %v108
    %v125 = vtanh.pop %v109
    %v126 = vtanh.pop %v110
    %v127 = vtanh.pop %v111
    %v128 = vtanh.pop %v112
    %v129 = vtanh.pop %v113
    %v130 = vtanh.pop %v114
    %v131 = vmul.f32 %v115, 0.5
    %v132 = vmul.f32 %v116, 0.5
    %v133 = vmul.f32 %v117, 0.5
    %v134 = vmul.f32 %v118, 0.5
    %v135 = vmul.f32 %v119, 0.5
    %v136 = vmul.f32 %v120, 0.5
    %v137 = vmul.f32 %v121, 0.5
    %v138 = vmul.f32 %v122, 0.5
    %v139 = vmul.f32 %v123, 0.5
    %v140 = vmul.f32 %v124, 0.5
    %v141 = vmul.f32 %v125, 0.5
    %v142 = vmul.f32 %v126, 0.5
    %v143 = vmul.f32 %v127, 0.5
    %v144 = vmul.f32 %v128, 0.5
    %v145 = vmul.f32 %v129, 0.5
    %v146 = vmul.f32 %v130, 0.5
    %v147 = vadd.f32 %v131, 0.5
    %v148 = vadd.f32 %v132, 0.5
    %v149 = vadd.f32 %v133, 0.5
    %v150 = vadd.f32 %v134, 0.5
    %v151 = vadd.f32 %v135, 0.5
    %v152 = vadd.f32 %v136, 0.5
    %v153 = vadd.f32 %v137, 0.5
    %v154 = vadd.f32 %v138, 0.5
    %v155 = vadd.f32 %v139, 0.5
    %v156 = vadd.f32 %v140, 0.5
    %v157 = vadd.f32 %v141, 0.5
    %v158 = vadd.f32 %v142, 0.5
    %v159 = vadd.f32 %v143, 0.5
    %v160 = vadd.f32 %v144, 0.5
    %v161 = vadd.f32 %v145, 0.5
    %v162 = vadd.f32 %v146, 0.5
    %v163 = vmul.f32 %v83, %v147
    %v164 = vmul.f32 %v84, %v148
    %v165 = vmul.f32 %v85, %v149
    %v166 = vmul.f32 %v86, %v150
    %v167 = vmul.f32 %v87, %v151
    %v168 = vmul.f32 %v88, %v152
    %v169 = vmul.f32 %v89, %v153
    %v170 = vmul.f32 %v90, %v154
    %v171 = vmul.f32 %v91, %v155
    %v172 = vmul.f32 %v92, %v156
    %v173 = vmul.f32 %v93, %v157
    %v174 = vmul.f32 %v94, %v158
    %v175 = vmul.f32 %v95, %v159
    %v176 = vmul.f32 %v96, %v160
    %v177 = vmul.f32 %v97, %v161
    %v178 = vmul.f32 %v98, %v162
    %v179 = vpack.c.bf16 %v164, %v163
    %v180 = vpack.c.bf16 %v166, %v165
    %v181 = vpack.c.bf16 %v168, %v167
    %v182 = vpack.c.bf16 %v170, %v169
    %v183 = vpack.c.bf16 %v172, %v171
    %v184 = vpack.c.bf16 %v174, %v173
    %v185 = vpack.c.bf16 %v176, %v175
    %v186 = vpack.c.bf16 %v178, %v177
    %s187 = smul.u32 0, 8
    %s188 = smul.addr %s187, 8
    %s189 = scalar_lea.vmem [#allocation2], %s188
    %190 = vst [vmem:[%s189] sm:$0xff] %v179
    %191 = vst [vmem:[%s189 + $0x8] sm:$0xff] %v180
    %192 = vst [vmem:[%s189 + $0x10] sm:$0xff] %v181
    %193 = vst [vmem:[%s189 + $0x18] sm:$0xff] %v182
    %194 = vst [vmem:[%s189 + $0x20] sm:$0xff] %v183
    %195 = vst [vmem:[%s189 + $0x28] sm:$0xff] %v184
    %196 = vst [vmem:[%s189 + $0x30] sm:$0xff] %v185
    %197 = vst [vmem:[%s189 + $0x38] sm:$0xff] %v186
  $region17: #{nac_forward.1} parent=0 // pred_fallthru
    _
  %p198 = scmp.eq.s32.totalorder 0, 0
  // Predicated region
  $region18: #{nac_forward.1} parent=0 // pred_check
    %p199 = pneg %p198
  $region19: #{nac_forward.1} parent=0 // pred_check_branch
    %201 = sbr.rel (%p199) target = $region21
  $region20: #{nac_forward.1} parent=0 // pred_region
    %202 = vst [vmem:[#allocation3] sm:$0xff] 0.0
    %203 = vst [vmem:[#allocation3 + $0x8] sm:$0xff] 0.0
  $region21: #{nac_forward.1} parent=0 // pred_fallthru
    _
  %v204 = vld [vmem:[#allocation3] sm:$0xff]
  %v205 = vld [vmem:[#allocation3 + $0x8] sm:$0xff]
  %v206 = vld [vmem:[%s0] sm:$0xf]
  %v207 = vld [vmem:[%s0 + $0x4] sm:$0xf]
  %s208 = smul.u32 0, 8
  %s209 = smul.addr %s208, 8
  %s210 = scalar_lea.vmem [#allocation2], %s209
  %v211 = vld [vmem:[%s210] sm:$0xff]
  %v212 = vld [vmem:[%s210 + $0x8] sm:$0xff]
  %v213 = vld [vmem:[%s210 + $0x10] sm:$0xff]
  %v214 = vld [vmem:[%s210 + $0x18] sm:$0xff]
  %v215 = vld [vmem:[%s210 + $0x20] sm:$0xff]
  %v216 = vld [vmem:[%s210 + $0x28] sm:$0xff]
  %v217 = vld [vmem:[%s210 + $0x30] sm:$0xff]
  %v218 = vld [vmem:[%s210 + $0x38] sm:$0xff]
  %v221 = vunpack.c.l.b16 %v206
  %v222 = vunpack.c.l.b16 %v207
  %v223 = vpack.c.b16 %v222, %v221
  %225 = vmatprep.subr.bf16.mxu0 0
  %226 = vmatpush1.bf16.msra.mxu0 %v211
  %227 = vmatprep.subr.bf16.mxu0 0
  %228 = vmatpush1.bf16.msra.mxu0 %v212
  %229 = vmatprep.subr.bf16.mxu0 0
  %230 = vmatpush1.bf16.msra.mxu0 %v213
  %231 = vmatprep.subr.bf16.mxu0 0
  %232 = vmatpush1.bf16.msra.mxu0 %v214
  %233 = vmatprep.subr.bf16.mxu0 0
  %234 = vmatpush1.bf16.msra.mxu0 %v215
  %235 = vmatprep.subr.bf16.mxu0 0
  %236 = vmatpush1.bf16.msra.mxu0 %v216
  %237 = vmatprep.subr.bf16.mxu0 0
  %238 = vmatpush1.bf16.msra.mxu0 %v217
  %239 = vmatprep.subr.bf16.mxu0 0
  %240 = vmatpush1.bf16.msra.mxu0 %v218
  %241 = vmatprep.subr.bf16.mxu0 0
  %242 = vmatpush1.bf16.msra.mxu0 0
  %243 = vmatprep.subr.bf16.mxu0 0
  %244 = vmatpush1.bf16.msra.mxu0 0
  %245 = vmatprep.subr.bf16.mxu0 0
  %246 = vmatpush1.bf16.msra.mxu0 0
  %247 = vmatprep.subr.bf16.mxu0 0
  %248 = vmatpush1.bf16.msra.mxu0 0
  %249 = vmatprep.subr.bf16.mxu0 0
  %250 = vmatpush1.bf16.msra.mxu0 0
  %251 = vmatprep.subr.bf16.mxu0 0
  %252 = vmatpush1.bf16.msra.mxu0 0
  %253 = vmatprep.subr.bf16.mxu0 0
  %254 = vmatpush1.bf16.msra.mxu0 0
  %255 = vmatprep.subr.bf16.mxu0 0
  %256 = vmatpush1.bf16.msra.mxu0 0
  %257 = vmatprep.mubr.bf16.mxu0 0
  %258 = vmatmul.mubr.bf16.gmra.mrb[0].mxu0 %v223
  %v259 = vpop.f32.mrb[0].mxu0
  %v260 = vadd.f32 0.0, %v259
  %v261 = vpop.f32.mrb[0].mxu0
  %v262 = vpop.f32.mrb[0].mxu0
  %v263 = vadd.f32 0.0, %v262
  %v264 = vpop.f32.mrb[0].mxu0
  %265 = vdwg.mxu0
  %v266 = vadd.f32 %v204, %v260
  %v267 = vadd.f32 %v205, %v263
  %268 = vst [vmem:[#allocation3] sm:$0xff] %v266
  %269 = vst [vmem:[#allocation3 + $0x8] sm:$0xff] %v267
  // Predicated region
  $region22: #{nac_forward.1} parent=0 // pred_check
    %p270 = pneg %p198
  $region23: #{nac_forward.1} parent=0 // pred_check_branch
    %272 = sbr.rel (%p270) target = $region25
  $region24: #{nac_forward.1} parent=0 // pred_region
    %v273 = vld [vmem:[#allocation3] sm:$0xff]
    %v274 = vld [vmem:[#allocation3 + $0x8] sm:$0xff]
    %275 = vst [vmem:[%s3] sm:$0xff] %v273
    %276 = vst [vmem:[%s3 + $0x8] sm:$0xff] %v274
  $region25: #{nac_forward.1} parent=0 // pred_fallthru
    _
  // Predicated region
  $region26: #{nac_forward.1} parent=0 // pred_check
    _
  $region27: #{nac_forward.1} parent=0 // pred_check_branch
    %278 = sbr.rel (0) target = $region29
  $region28: #{nac_forward.1} parent=0 // pred_region
    _
  $region29: #{nac_forward.1} parent=0 // pred_fallthru
    _
  // Predicated region
  $region30: #{nac_forward.1} parent=0 // pred_check
    _
  $region31: #{nac_forward.1} parent=0 // pred_check_branch
    %280 = sbr.rel (0) target = $region33
  $region32: #{nac_forward.1} parent=0 // pred_region
    _
  $region33: #{nac_forward.1} parent=0 // pred_fallthru
    _

</llo_original>
